<compile_context>
chip_gen: v7x
topology: tpu7x:2x2x1
jax: 0.10.0
libtpu: 0.0.40
codegen_flags: <defaults>
</compile_context>

<pallas_src>
import functools

import jax
import jax.numpy as jnp
from jax.experimental import pallas as pl
from jax.experimental.pallas import tpu as pltpu


def _resolve_act(name):
    """Map the PyTorch F.<name> activation name to a JAX callable.

    Note: only simple elementwise activations (relu, tanh, sigmoid, ...) are
    supported; activations needing kwargs (softmax's dim, leaky_relu's slope)
    are out of scope for this module's default usage.
    """
    if name is None:
        return None
    if hasattr(jax.nn, name):          # relu, sigmoid, tanh, gelu, ...
        return getattr(jax.nn, name)
    return getattr(jnp, name)          # fallback for jnp-named elementwise fns


def _res_rnn_kernel(x_ref, w1_ref, b_ref, w2t_ref, w3t_ref, y_ref, *, act_fn):
    """Fully-fused residual RNN over one batch chunk.

    x_ref  : (bb, T)      raw input chunk
    w1_ref : (1, H)       W1 row (input_size == 1)
    b_ref  : (1, H)       b_h row
    w2t_ref: (H, H)       W2^T
    w3t_ref: (H, O)       W3^T
    y_ref  : (bb, T*O)    B-major, lane-dense stacked outputs

    The time loop is fully unrolled (T is small and static); the only serial
    dependency per step is one (bb,H)x(H,H) matmul (+ one VPU add).
    """
    bb, T = x_ref.shape
    H = w2t_ref.shape[0]
    O = w3t_ref.shape[1]

    x = x_ref[...]                     # (bb, T), one load
    w1 = w1_ref[...]                   # (1, H)
    b = b_ref[...]                     # (1, H)
    w2t = w2t_ref[...]                 # (H, H)
    w3t = w3t_ref[...]                 # (H, O)

    if act_fn is None:
        # Linear case: fold the residual add into the carried weight,
        #   h_acc_t = h_acc_{t-1} @ (W2^T + I) + xw_t
        # so the serial chain per step is matmul + add only.
        row = jax.lax.broadcasted_iota(jnp.int32, (H, H), 0)
        col = jax.lax.broadcasted_iota(jnp.int32, (H, H), 1)
        eye = jnp.where(row == col, 1.0, 0.0).astype(jnp.float32)
        carry_mat = w2t + eye
    else:
        carry_mat = w2t

    h_acc = jnp.zeros((bb, H), dtype=jnp.float32)
    y_chunks = []
    for t in range(T):                 # fully unrolled, static indices
        # Input projection + bias: off the serial chain (depends only on x).
        xw_t = x[:, t:t + 1] * w1 + b                       # (bb, H)
        hm = jnp.dot(h_acc, carry_mat,
                     preferred_element_type=jnp.float32) + xw_t
        if act_fn is None:
            h_new = hm                                      # = h_pre + h_acc
            h_pre = h_new - h_acc                           # off-chain recover
        else:
            h_pre = act_fn(hm)                              # EUP, per step
            h_new = h_pre + h_acc
        # Tiny output projection: independent of the recurrence -> off-chain.
        y_chunks.append(jnp.dot(h_pre, w3t,
                                preferred_element_type=jnp.float32))
        h_acc = h_new

    # One dense, B-major, lane-dense store (the HBM writeback is a single
    # contiguous (bb, T*O) DMA).
    y_ref[...] = jnp.concatenate(y_chunks, axis=1).astype(y_ref.dtype)


@functools.partial(jax.jit, static_argnames=("f_hidden",))
def custom_res_forward(x, W1, W2, W3, b_h, f_hidden=None):
    """x: (B, T) float32.  W1: (H, 1), W2: (H, H), W3: (O, H), b_h: (H,).
    Returns ys: (B, T, O) — matches the PyTorch CustomRes.forward output."""
    B, T = x.shape
    H, D = W1.shape
    O = W3.shape[0]
    assert D == 1, "CustomRes with 2-D x requires input_size == 1 (as in the PyTorch module)."

    act_fn = _resolve_act(f_hidden)

    # Tiny layout prep; lives inside the same jit-ed executable as the kernel.
    xf = x.astype(jnp.float32)
    w1r = W1.reshape(1, H).astype(jnp.float32)     # W1[:, 0] as a lane row
    br = b_h.reshape(1, H).astype(jnp.float32)
    w2t = W2.T.astype(jnp.float32)                 # (H, H)
    w3t = W3.T.astype(jnp.float32)                 # (H, O)

    # Optional batch chunking: a leading "parallel" grid axis lets megacore
    # parts run independent batch chunks on separate TensorCores. Only split
    # when each chunk keeps a sublane-aligned (multiple of 8) row count.
    if B % 2 == 0 and (B // 2) % 8 == 0:
        nb = 2
    else:
        nb = 1
    bb = B // nb

    y_flat = pl.pallas_call(
        functools.partial(_res_rnn_kernel, act_fn=act_fn),
        out_shape=jax.ShapeDtypeStruct((B, T * O), jnp.float32),
        grid=(nb,),
        in_specs=[
            pl.BlockSpec((bb, T), lambda i: (i, 0)),       # x chunk
            pl.BlockSpec((1, H), lambda i: (0, 0)),        # W1 row
            pl.BlockSpec((1, H), lambda i: (0, 0)),        # b_h row
            pl.BlockSpec((H, H), lambda i: (0, 0)),        # W2^T
            pl.BlockSpec((H, O), lambda i: (0, 0)),        # W3^T
        ],
        out_specs=pl.BlockSpec((bb, T * O), lambda i: (i, 0)),
        compiler_params=pltpu.CompilerParams(
            dimension_semantics=("parallel",)),            # batch chunks are independent
    )(xf, w1r, br, w2t, w3t)

    # Free contiguous reshape: (B, T*O) -> (B, T, O).
    return y_flat.reshape(B, T, O)


def custom_res_reference(x, W1, W2, W3, b_h, f_hidden=None):
    """Pure-JAX reference (lax.scan) mirroring the PyTorch loop."""
    B, T = x.shape
    H = W1.shape[0]
    act = _resolve_act(f_hidden)

    def step(h_acc, xt):
        h_pre = h_acc @ W2.T + xt @ W1.T + b_h
        if act is not None:
            h_pre = act(h_pre)
        y = h_pre @ W3.T
        return h_pre + h_acc, y

    xs = jnp.transpose(x.reshape(B, T, 1), (1, 0, 2))
    _, ys = jax.lax.scan(step, jnp.zeros((B, H), jnp.float32), xs)
    return jnp.transpose(ys, (1, 0, 2))


if __name__ == "__main__":
    # Small shapes consistent with the module: input_size=1, output_size=4,
    # hidden_size=32, batch=8, seq=8.
    batch, seq = 8, 8
    input_size, hidden_size, output_size = 1, 32, 4
    W_scale = 0.1

    key = jax.random.PRNGKey(0)
    kx, k1, k2, k3 = jax.random.split(key, 4)

    x = jax.random.normal(kx, (batch, seq), dtype=jnp.float32)
    # torch.rand -> U[0,1); (rand - 0.5) * W_scale
    W1 = (jax.random.uniform(k1, (hidden_size, input_size)) - 0.5) * W_scale
    W2 = (jax.random.uniform(k2, (hidden_size, hidden_size)) - 0.5) * W_scale
    W3 = (jax.random.uniform(k3, (output_size, hidden_size)) - 0.5) * W_scale
    b_h = jnp.zeros((hidden_size,), dtype=jnp.float32)

    # Default path (f_hidden=None), as in the module's default construction.
    ys = custom_res_forward(x, W1, W2, W3, b_h, f_hidden=None)
    ys = jax.block_until_ready(ys)
    ys_ref = custom_res_reference(x, W1, W2, W3, b_h, f_hidden=None)
    assert ys.shape == (batch, seq, output_size)
    assert jnp.allclose(ys, ys_ref, atol=1e-5, rtol=1e-5), "mismatch (linear)"

    # Activation path (exercises the per-step f_hidden handling).
    ys_t = custom_res_forward(x, W1, W2, W3, b_h, f_hidden="tanh")
    ys_t = jax.block_until_ready(ys_t)
    ys_t_ref = custom_res_reference(x, W1, W2, W3, b_h, f_hidden="tanh")
    assert jnp.allclose(ys_t, ys_t_ref, atol=1e-5, rtol=1e-5), "mismatch (tanh)"

    print("KERNEL_OK")
</pallas_src>

<mosaic_0001>
module attributes {stable_mosaic.version = 11 : i64} {
  func.func @_res_rnn_kernel(%arg0: i32, %arg1: memref<8x8xf32, #tpu.memory_space<vmem>>, %arg2: memref<1x32xf32, #tpu.memory_space<vmem>>, %arg3: memref<1x32xf32, #tpu.memory_space<vmem>>, %arg4: memref<32x32xf32, #tpu.memory_space<vmem>>, %arg5: memref<32x4xf32, #tpu.memory_space<vmem>>, %arg6: memref<8x32xf32, #tpu.memory_space<vmem>>) attributes {dimension_semantics = [#tpu.dimension_semantics<parallel>], iteration_bounds = array<i64: 1>, scalar_prefetch = 0 : i64, scratch_operands = 0 : i64, tpu.core_type = #tpu.core_type<tc>, window_params = [{transform_indices = @transform_0, window_bounds = array<i64: 8, 8>}, {pipeline_mode = #tpu.pipeline_mode<synchronous>, transform_indices = @transform_1, window_bounds = array<i64: 1, 32>}, {pipeline_mode = #tpu.pipeline_mode<synchronous>, transform_indices = @transform_2, window_bounds = array<i64: 1, 32>}, {pipeline_mode = #tpu.pipeline_mode<synchronous>, transform_indices = @transform_3, window_bounds = array<i64: 32, 32>}, {pipeline_mode = #tpu.pipeline_mode<synchronous>, transform_indices = @transform_4, window_bounds = array<i64: 32, 4>}, {transform_indices = @transform_5, window_bounds = array<i64: 8, 32>}]} {
    %c0 = arith.constant 0 : index
    %c0_0 = arith.constant 0 : index
    %0 = vector.load %arg1[%c0, %c0_0] : memref<8x8xf32, #tpu.memory_space<vmem>>, vector<8x8xf32>
    %c0_1 = arith.constant 0 : index
    %c0_2 = arith.constant 0 : index
    %1 = vector.load %arg2[%c0_1, %c0_2] : memref<1x32xf32, #tpu.memory_space<vmem>>, vector<1x32xf32>
    %c0_3 = arith.constant 0 : index
    %c0_4 = arith.constant 0 : index
    %2 = vector.load %arg3[%c0_3, %c0_4] : memref<1x32xf32, #tpu.memory_space<vmem>>, vector<1x32xf32>
    %c0_5 = arith.constant 0 : index
    %c0_6 = arith.constant 0 : index
    %3 = vector.load %arg4[%c0_5, %c0_6] : memref<32x32xf32, #tpu.memory_space<vmem>>, vector<32x32xf32>
    %c0_7 = arith.constant 0 : index
    %c0_8 = arith.constant 0 : index
    %4 = vector.load %arg5[%c0_7, %c0_8] : memref<32x4xf32, #tpu.memory_space<vmem>>, vector<32x4xf32>
    %5 = tpu.iota {dimensions = array<i32: 0>} : vector<32x32xi32>
    %6 = tpu.iota {dimensions = array<i32: 1>} : vector<32x32xi32>
    %7 = arith.cmpi eq, %5, %6 : vector<32x32xi32>
    %cst = arith.constant 1.000000e+00 : f32
    %cst_9 = arith.constant 0.000000e+00 : f32
    %8 = vector.broadcast %cst : f32 to vector<32x32xf32>
    %9 = vector.broadcast %cst_9 : f32 to vector<32x32xf32>
    %10 = arith.select %7, %8, %9 : vector<32x32xi1>, vector<32x32xf32>
    %11 = arith.addf %3, %10 : vector<32x32xf32>
    %cst_10 = arith.constant 0.000000e+00 : f32
    %12 = vector.broadcast %cst_10 : f32 to vector<8x32xf32>
    %13 = vector.extract_strided_slice %0 {offsets = [0, 0], sizes = [8, 1], strides = [1, 1]} : vector<8x8xf32> to vector<8x1xf32>
    %14 = vector.broadcast %13 : vector<8x1xf32> to vector<8x32xf32>
    %15 = vector.broadcast %1 : vector<1x32xf32> to vector<8x32xf32>
    %16 = arith.mulf %14, %15 : vector<8x32xf32>
    %17 = vector.broadcast %2 : vector<1x32xf32> to vector<8x32xf32>
    %18 = arith.addf %16, %17 : vector<8x32xf32>
    %cst_11 = arith.constant dense<0.000000e+00> : vector<8x32xf32>
    %19 = tpu.matmul %12, %11, %cst_11 {dimension_numbers = #tpu.dot_dimension_numbers<[1], [0], [0], [1], [0, 0, 1, 1], [], []>} : vector<8x32xf32>, vector<32x32xf32>, vector<8x32xf32> -> vector<8x32xf32>
    %20 = arith.addf %19, %18 : vector<8x32xf32>
    %21 = arith.subf %20, %12 : vector<8x32xf32>
    %cst_12 = arith.constant dense<0.000000e+00> : vector<8x4xf32>
    %22 = tpu.matmul %21, %4, %cst_12 {dimension_numbers = #tpu.dot_dimension_numbers<[1], [0], [0], [1], [0, 0, 1, 1], [], []>} : vector<8x32xf32>, vector<32x4xf32>, vector<8x4xf32> -> vector<8x4xf32>
    %23 = vector.extract_strided_slice %0 {offsets = [0, 1], sizes = [8, 1], strides = [1, 1]} : vector<8x8xf32> to vector<8x1xf32>
    %24 = vector.broadcast %23 : vector<8x1xf32> to vector<8x32xf32>
    %25 = vector.broadcast %1 : vector<1x32xf32> to vector<8x32xf32>
    %26 = arith.mulf %24, %25 : vector<8x32xf32>
    %27 = vector.broadcast %2 : vector<1x32xf32> to vector<8x32xf32>
    %28 = arith.addf %26, %27 : vector<8x32xf32>
    %cst_13 = arith.constant dense<0.000000e+00> : vector<8x32xf32>
    %29 = tpu.matmul %20, %11, %cst_13 {dimension_numbers = #tpu.dot_dimension_numbers<[1], [0], [0], [1], [0, 0, 1, 1], [], []>} : vector<8x32xf32>, vector<32x32xf32>, vector<8x32xf32> -> vector<8x32xf32>
    %30 = arith.addf %29, %28 : vector<8x32xf32>
    %31 = arith.subf %30, %20 : vector<8x32xf32>
    %cst_14 = arith.constant dense<0.000000e+00> : vector<8x4xf32>
    %32 = tpu.matmul %31, %4, %cst_14 {dimension_numbers = #tpu.dot_dimension_numbers<[1], [0], [0], [1], [0, 0, 1, 1], [], []>} : vector<8x32xf32>, vector<32x4xf32>, vector<8x4xf32> -> vector<8x4xf32>
    %33 = vector.extract_strided_slice %0 {offsets = [0, 2], sizes = [8, 1], strides = [1, 1]} : vector<8x8xf32> to vector<8x1xf32>
    %34 = vector.broadcast %33 : vector<8x1xf32> to vector<8x32xf32>
    %35 = vector.broadcast %1 : vector<1x32xf32> to vector<8x32xf32>
    %36 = arith.mulf %34, %35 : vector<8x32xf32>
    %37 = vector.broadcast %2 : vector<1x32xf32> to vector<8x32xf32>
    %38 = arith.addf %36, %37 : vector<8x32xf32>
    %cst_15 = arith.constant dense<0.000000e+00> : vector<8x32xf32>
    %39 = tpu.matmul %30, %11, %cst_15 {dimension_numbers = #tpu.dot_dimension_numbers<[1], [0], [0], [1], [0, 0, 1, 1], [], []>} : vector<8x32xf32>, vector<32x32xf32>, vector<8x32xf32> -> vector<8x32xf32>
    %40 = arith.addf %39, %38 : vector<8x32xf32>
    %41 = arith.subf %40, %30 : vector<8x32xf32>
    %cst_16 = arith.constant dense<0.000000e+00> : vector<8x4xf32>
    %42 = tpu.matmul %41, %4, %cst_16 {dimension_numbers = #tpu.dot_dimension_numbers<[1], [0], [0], [1], [0, 0, 1, 1], [], []>} : vector<8x32xf32>, vector<32x4xf32>, vector<8x4xf32> -> vector<8x4xf32>
    %43 = vector.extract_strided_slice %0 {offsets = [0, 3], sizes = [8, 1], strides = [1, 1]} : vector<8x8xf32> to vector<8x1xf32>
    %44 = vector.broadcast %43 : vector<8x1xf32> to vector<8x32xf32>
    %45 = vector.broadcast %1 : vector<1x32xf32> to vector<8x32xf32>
    %46 = arith.mulf %44, %45 : vector<8x32xf32>
    %47 = vector.broadcast %2 : vector<1x32xf32> to vector<8x32xf32>
    %48 = arith.addf %46, %47 : vector<8x32xf32>
    %cst_17 = arith.constant dense<0.000000e+00> : vector<8x32xf32>
    %49 = tpu.matmul %40, %11, %cst_17 {dimension_numbers = #tpu.dot_dimension_numbers<[1], [0], [0], [1], [0, 0, 1, 1], [], []>} : vector<8x32xf32>, vector<32x32xf32>, vector<8x32xf32> -> vector<8x32xf32>
    %50 = arith.addf %49, %48 : vector<8x32xf32>
    %51 = arith.subf %50, %40 : vector<8x32xf32>
    %cst_18 = arith.constant dense<0.000000e+00> : vector<8x4xf32>
    %52 = tpu.matmul %51, %4, %cst_18 {dimension_numbers = #tpu.dot_dimension_numbers<[1], [0], [0], [1], [0, 0, 1, 1], [], []>} : vector<8x32xf32>, vector<32x4xf32>, vector<8x4xf32> -> vector<8x4xf32>
    %53 = vector.extract_strided_slice %0 {offsets = [0, 4], sizes = [8, 1], strides = [1, 1]} : vector<8x8xf32> to vector<8x1xf32>
    %54 = vector.broadcast %53 : vector<8x1xf32> to vector<8x32xf32>
    %55 = vector.broadcast %1 : vector<1x32xf32> to vector<8x32xf32>
    %56 = arith.mulf %54, %55 : vector<8x32xf32>
    %57 = vector.broadcast %2 : vector<1x32xf32> to vector<8x32xf32>
    %58 = arith.addf %56, %57 : vector<8x32xf32>
    %cst_19 = arith.constant dense<0.000000e+00> : vector<8x32xf32>
    %59 = tpu.matmul %50, %11, %cst_19 {dimension_numbers = #tpu.dot_dimension_numbers<[1], [0], [0], [1], [0, 0, 1, 1], [], []>} : vector<8x32xf32>, vector<32x32xf32>, vector<8x32xf32> -> vector<8x32xf32>
    %60 = arith.addf %59, %58 : vector<8x32xf32>
    %61 = arith.subf %60, %50 : vector<8x32xf32>
    %cst_20 = arith.constant dense<0.000000e+00> : vector<8x4xf32>
    %62 = tpu.matmul %61, %4, %cst_20 {dimension_numbers = #tpu.dot_dimension_numbers<[1], [0], [0], [1], [0, 0, 1, 1], [], []>} : vector<8x32xf32>, vector<32x4xf32>, vector<8x4xf32> -> vector<8x4xf32>
    %63 = vector.extract_strided_slice %0 {offsets = [0, 5], sizes = [8, 1], strides = [1, 1]} : vector<8x8xf32> to vector<8x1xf32>
    %64 = vector.broadcast %63 : vector<8x1xf32> to vector<8x32xf32>
    %65 = vector.broadcast %1 : vector<1x32xf32> to vector<8x32xf32>
    %66 = arith.mulf %64, %65 : vector<8x32xf32>
    %67 = vector.broadcast %2 : vector<1x32xf32> to vector<8x32xf32>
    %68 = arith.addf %66, %67 : vector<8x32xf32>
    %cst_21 = arith.constant dense<0.000000e+00> : vector<8x32xf32>
    %69 = tpu.matmul %60, %11, %cst_21 {dimension_numbers = #tpu.dot_dimension_numbers<[1], [0], [0], [1], [0, 0, 1, 1], [], []>} : vector<8x32xf32>, vector<32x32xf32>, vector<8x32xf32> -> vector<8x32xf32>
    %70 = arith.addf %69, %68 : vector<8x32xf32>
    %71 = arith.subf %70, %60 : vector<8x32xf32>
    %cst_22 = arith.constant dense<0.000000e+00> : vector<8x4xf32>
    %72 = tpu.matmul %71, %4, %cst_22 {dimension_numbers = #tpu.dot_dimension_numbers<[1], [0], [0], [1], [0, 0, 1, 1], [], []>} : vector<8x32xf32>, vector<32x4xf32>, vector<8x4xf32> -> vector<8x4xf32>
    %73 = vector.extract_strided_slice %0 {offsets = [0, 6], sizes = [8, 1], strides = [1, 1]} : vector<8x8xf32> to vector<8x1xf32>
    %74 = vector.broadcast %73 : vector<8x1xf32> to vector<8x32xf32>
    %75 = vector.broadcast %1 : vector<1x32xf32> to vector<8x32xf32>
    %76 = arith.mulf %74, %75 : vector<8x32xf32>
    %77 = vector.broadcast %2 : vector<1x32xf32> to vector<8x32xf32>
    %78 = arith.addf %76, %77 : vector<8x32xf32>
    %cst_23 = arith.constant dense<0.000000e+00> : vector<8x32xf32>
    %79 = tpu.matmul %70, %11, %cst_23 {dimension_numbers = #tpu.dot_dimension_numbers<[1], [0], [0], [1], [0, 0, 1, 1], [], []>} : vector<8x32xf32>, vector<32x32xf32>, vector<8x32xf32> -> vector<8x32xf32>
    %80 = arith.addf %79, %78 : vector<8x32xf32>
    %81 = arith.subf %80, %70 : vector<8x32xf32>
    %cst_24 = arith.constant dense<0.000000e+00> : vector<8x4xf32>
    %82 = tpu.matmul %81, %4, %cst_24 {dimension_numbers = #tpu.dot_dimension_numbers<[1], [0], [0], [1], [0, 0, 1, 1], [], []>} : vector<8x32xf32>, vector<32x4xf32>, vector<8x4xf32> -> vector<8x4xf32>
    %83 = vector.extract_strided_slice %0 {offsets = [0, 7], sizes = [8, 1], strides = [1, 1]} : vector<8x8xf32> to vector<8x1xf32>
    %84 = vector.broadcast %83 : vector<8x1xf32> to vector<8x32xf32>
    %85 = vector.broadcast %1 : vector<1x32xf32> to vector<8x32xf32>
    %86 = arith.mulf %84, %85 : vector<8x32xf32>
    %87 = vector.broadcast %2 : vector<1x32xf32> to vector<8x32xf32>
    %88 = arith.addf %86, %87 : vector<8x32xf32>
    %cst_25 = arith.constant dense<0.000000e+00> : vector<8x32xf32>
    %89 = tpu.matmul %80, %11, %cst_25 {dimension_numbers = #tpu.dot_dimension_numbers<[1], [0], [0], [1], [0, 0, 1, 1], [], []>} : vector<8x32xf32>, vector<32x32xf32>, vector<8x32xf32> -> vector<8x32xf32>
    %90 = arith.addf %89, %88 : vector<8x32xf32>
    %91 = arith.subf %90, %80 : vector<8x32xf32>
    %cst_26 = arith.constant dense<0.000000e+00> : vector<8x4xf32>
    %92 = tpu.matmul %91, %4, %cst_26 {dimension_numbers = #tpu.dot_dimension_numbers<[1], [0], [0], [1], [0, 0, 1, 1], [], []>} : vector<8x32xf32>, vector<32x4xf32>, vector<8x4xf32> -> vector<8x4xf32>
    %93 = tpu.concatenate %22, %32, %42, %52, %62, %72, %82, %92 in 1 : vector<8x4xf32>, vector<8x4xf32>, vector<8x4xf32>, vector<8x4xf32>, vector<8x4xf32>, vector<8x4xf32>, vector<8x4xf32>, vector<8x4xf32> -> vector<8x32xf32>
    %c0_27 = arith.constant 0 : index
    %c0_28 = arith.constant 0 : index
    %94 = vector.load %arg6[%c0_27, %c0_28] : memref<8x32xf32, #tpu.memory_space<vmem>>, vector<8x32xf32>
    tpu.vector_store %arg6[%c0_27, %c0_28], %93 {strides = array<i32>} : memref<8x32xf32, #tpu.memory_space<vmem>>, vector<8x32xf32>,
    return
  }
  func.func @transform_0(%arg0: i32) -> (i32, i32) {
    %c0_i32 = arith.constant 0 : i32
    %c0_i32_0 = arith.constant 0 : i32
    return %arg0, %c0_i32 : i32, i32
  }
  func.func @transform_1(%arg0: i32) -> (i32, i32) {
    %c0_i32 = arith.constant 0 : i32
    %c0_i32_0 = arith.constant 0 : i32
    %c0_i32_1 = arith.constant 0 : i32
    return %c0_i32, %c0_i32_0 : i32, i32
  }
  func.func @transform_2(%arg0: i32) -> (i32, i32) {
    %c0_i32 = arith.constant 0 : i32
    %c0_i32_0 = arith.constant 0 : i32
    %c0_i32_1 = arith.constant 0 : i32
    return %c0_i32, %c0_i32_0 : i32, i32
  }
  func.func @transform_3(%arg0: i32) -> (i32, i32) {
    %c0_i32 = arith.constant 0 : i32
    %c0_i32_0 = arith.constant 0 : i32
    %c0_i32_1 = arith.constant 0 : i32
    return %c0_i32, %c0_i32_0 : i32, i32
  }
  func.func @transform_4(%arg0: i32) -> (i32, i32) {
    %c0_i32 = arith.constant 0 : i32
    %c0_i32_0 = arith.constant 0 : i32
    %c0_i32_1 = arith.constant 0 : i32
    return %c0_i32, %c0_i32_0 : i32, i32
  }
  func.func @transform_5(%arg0: i32) -> (i32, i32) {
    %c0_i32 = arith.constant 0 : i32
    %c0_i32_0 = arith.constant 0 : i32
    return %arg0, %c0_i32 : i32, i32
  }
}

</mosaic_0001>

<llo_original>
// kernel: custom_res_forward.1
$region0: #{custom_res_forward.1}
  #allocation0 [shape = 'u32[]', space=smem, size = 0x4, offset = 0x4, fixed_abs, tag = 'smem constant byte address 0x4 - core index']
  #allocation1 [shape = 'u32[144,128]{1,0:T(1,128)}', space=vmem, size = 0x12000, scoped, tag = 'internal scratch']
  %s0 = inlined_call_operand.vmem [shape: f32[8,8], index: 0, kind: input, shape index: {}]
  %s1 = inlined_call_operand.vmem [shape: f32[1,32], index: 1, kind: input, shape index: {}]
  %s2 = inlined_call_operand.vmem [shape: f32[1,32], index: 2, kind: input, shape index: {}]
  %s3 = inlined_call_operand.vmem [shape: f32[32,32], index: 3, kind: input, shape index: {}]
  %s4 = inlined_call_operand.vmem [shape: f32[32,4], index: 4, kind: input, shape index: {}]
  %s5 = inlined_call_operand.vmem [shape: f32[8,32], index: 5, kind: output, shape index: {}]
  %s6 = sld [smem:[#allocation0]]
  $region30: #{custom_res_forward.1} parent=0
    _
  %s8 = ssub.s32 1, %s6
  %s9 = scalar_select 0, %s8, %s6
  // Predicated region
  $region2: #{custom_res_forward.1} parent=0 // pred_check
    _
  $region3: #{custom_res_forward.1} parent=0 // pred_check_branch
    %11 = sbr.rel (0) target = $region5
  $region4: #{custom_res_forward.1} parent=0 // pred_region
    _
  $region5: #{custom_res_forward.1} parent=0 // pred_fallthru
    _
  // Predicated region
  $region6: #{custom_res_forward.1} parent=0 // pred_check
    _
  $region7: #{custom_res_forward.1} parent=0 // pred_check_branch
    %13 = sbr.rel (0) target = $region9
  $region8: #{custom_res_forward.1} parent=0 // pred_region
    _
  $region9: #{custom_res_forward.1} parent=0 // pred_fallthru
    _
  // Predicated region
  $region10: #{custom_res_forward.1} parent=0 // pred_check
    _
  $region11: #{custom_res_forward.1} parent=0 // pred_check_branch
    %15 = sbr.rel (0) target = $region13
  $region12: #{custom_res_forward.1} parent=0 // pred_region
    _
  $region13: #{custom_res_forward.1} parent=0 // pred_fallthru
    _
  // Predicated region
  $region14: #{custom_res_forward.1} parent=0 // pred_check
    _
  $region15: #{custom_res_forward.1} parent=0 // pred_check_branch
    %17 = sbr.rel (0) target = $region17
  $region16: #{custom_res_forward.1} parent=0 // pred_region
    _
  $region17: #{custom_res_forward.1} parent=0 // pred_fallthru
    _
  // Predicated region
  $region18: #{custom_res_forward.1} parent=0 // pred_check
    _
  $region19: #{custom_res_forward.1} parent=0 // pred_check_branch
    %19 = sbr.rel (0) target = $region21
  $region20: #{custom_res_forward.1} parent=0 // pred_region
    _
  $region21: #{custom_res_forward.1} parent=0 // pred_fallthru
    _
  %v20 = vld [vmem:[%s0] sm:$0xff]
  %v21 = vld [vmem:[%s1] sm:$0x1]
  %v22 = vld [vmem:[%s2] sm:$0x1]
  %v23 = vld [vmem:[%s3] sm:$0xff]
  %v24 = vld [vmem:[%s3 + $0x8] sm:$0xff]
  %v25 = vld [vmem:[%s3 + $0x10] sm:$0xff]
  %v26 = vld [vmem:[%s3 + $0x18] sm:$0xff]
  %v27 = vld [vmem:[%s4] sm:$0xff]
  %v28 = vld [vmem:[%s4 + $0x8] sm:$0xff]
  %v29 = vld [vmem:[%s4 + $0x10] sm:$0xff]
  %v30 = vld [vmem:[%s4 + $0x18] sm:$0xff]
  %v31 = vlaneseq
  %v32 = vshrl.u32 %v31, 7
  %v33 = vadd.s32 %v32, 8
  %v34 = vadd.s32 %v32, 16
  %v35 = vadd.s32 %v32, 24
  %v36 = vlaneseq
  %v37 = vand.u32 %v36, 127
  %vm38 = vcmp.eq.s32.totalorder %v32, %v37
  %vm39 = vcmp.eq.s32.totalorder %v33, %v37
  %vm40 = vcmp.eq.s32.totalorder %v34, %v37
  %vm41 = vcmp.eq.s32.totalorder %v35, %v37
  %v42 = vsel %vm38, 1.0, 0.0
  %v43 = vsel %vm39, 1.0, 0.0
  %v44 = vsel %vm40, 1.0, 0.0
  %v45 = vsel %vm41, 1.0, 0.0
  %v46 = vadd.f32 %v23, %v42
  %v47 = vadd.f32 %v24, %v43
  %v48 = vadd.f32 %v25, %v44
  %v49 = vadd.f32 %v26, %v45
  %51 = vset.pattern.permute.xlu0 0
  %52 = vperm.xlu0 %51, %v20
  %v53 = vpop.permute.xlu0 %52
  %v56 = vlaneseq
  %v57 = vshrl.u32 %v56, 7
  %v58 = vsub.s32 0, %v57
  %v59 = vrot.slane %v21, %v58
  %v61 = vmul.f32 %v53, %v59
  %v63 = vlaneseq
  %v64 = vshrl.u32 %v63, 7
  %v65 = vsub.s32 0, %v64
  %v66 = vrot.slane %v22, %v65
  %v68 = vadd.f32 %v61, %v66
  %vm69 = vcmask 261120
  %v71 = vsel %vm69, 0.0, 0
  %73 = vmatprep.subr.mxu0 0.0
  %74 = vmatpush1.msra.mxu0 %v46
  %75 = vmatprep.subr.mxu0 0.0
  %76 = vmatpush1.msra.mxu0 %v47
  %77 = vmatprep.subr.mxu0 0.0
  %78 = vmatpush1.msra.mxu0 %v48
  %79 = vmatprep.subr.mxu0 0.0
  %80 = vmatpush1.msra.mxu0 %v49
  %81 = vmatprep.subr.mxu0 0.0
  %82 = vmatpush1.msra.mxu0 0.0
  %83 = vmatprep.subr.mxu0 0.0
  %84 = vmatpush1.msra.mxu0 0.0
  %85 = vmatprep.subr.mxu0 0.0
  %86 = vmatpush1.msra.mxu0 0.0
  %87 = vmatprep.subr.mxu0 0.0
  %88 = vmatpush1.msra.mxu0 0.0
  %89 = vmatprep.subr.mxu0 0.0
  %90 = vmatpush1.msra.mxu0 0.0
  %91 = vmatprep.subr.mxu0 0.0
  %92 = vmatpush1.msra.mxu0 0.0
  %93 = vmatprep.subr.mxu0 0.0
  %94 = vmatpush1.msra.mxu0 0.0
  %95 = vmatprep.subr.mxu0 0.0
  %96 = vmatpush1.msra.mxu0 0.0
  %97 = vmatprep.subr.mxu0 0.0
  %98 = vmatpush1.msra.mxu0 0.0
  %99 = vmatprep.subr.mxu0 0.0
  %100 = vmatpush1.msra.mxu0 0.0
  %101 = vmatprep.subr.mxu0 0.0
  %102 = vmatpush1.msra.mxu0 0.0
  %103 = vmatprep.subr.mxu0 0.0
  %104 = vmatpush1.msra.mxu0 0.0
  %105 = vmatprep.subr.mxu0 0.0
  %106 = vmatpush1.msra.mxu0 0.0
  %107 = vmatprep.subr.mxu0 0.0
  %108 = vmatpush1.msra.mxu0 0.0
  %109 = vmatprep.subr.mxu0 0.0
  %110 = vmatpush1.msra.mxu0 0.0
  %111 = vmatprep.subr.mxu0 0.0
  %112 = vmatpush1.msra.mxu0 0.0
  %113 = vmatprep.subr.mxu0 0.0
  %114 = vmatpush1.msra.mxu0 0.0
  %115 = vmatprep.subr.mxu0 0.0
  %116 = vmatpush1.msra.mxu0 0.0
  %117 = vmatprep.subr.mxu0 0.0
  %118 = vmatpush1.msra.mxu0 0.0
  %119 = vmatprep.subr.mxu0 0.0
  %120 = vmatpush1.msra.mxu0 0.0
  %121 = vmatprep.subr.mxu0 0.0
  %122 = vmatpush1.msra.mxu0 0.0
  %123 = vmatprep.subr.mxu0 0.0
  %124 = vmatpush1.msra.mxu0 0.0
  %125 = vmatprep.subr.mxu0 0.0
  %126 = vmatpush1.msra.mxu0 0.0
  %127 = vmatprep.subr.mxu0 0.0
  %128 = vmatpush1.msra.mxu0 0.0
  %129 = vmatprep.subr.mxu0 0.0
  %130 = vmatpush1.msra.mxu0 0.0
  %131 = vmatprep.subr.mxu0 0.0
  %132 = vmatpush1.msra.mxu0 0.0
  %133 = vmatprep.subr.mxu0 0.0
  %134 = vmatpush1.msra.mxu0 0.0
  %135 = vmatprep.subr.mxu0 0.0
  %136 = vmatpush1.msra.mxu0 0.0
  %137 = vmatprep.mubr.f32.mxu0 0.0
  %138 = vmatmul.mubr.f32.gmra.mrb[0].mxu0 %v71
  %v139 = vpop.f32.mrb[0].mxu0
  %v140 = vadd.f32 %v68, %v139
  %v141 = vpop.f32.mrb[0].mxu0
  %142 = vdwg.mxu0
  %v144 = vsel %vm69, %v140, 0
  %146 = vmatprep.subr.mxu0 0.0
  %147 = vmatpush1.msra.mxu0 %v27
  %148 = vmatprep.subr.mxu0 0.0
  %149 = vmatpush1.msra.mxu0 %v28
  %150 = vmatprep.subr.mxu0 0.0
  %151 = vmatpush1.msra.mxu0 %v29
  %152 = vmatprep.subr.mxu0 0.0
  %153 = vmatpush1.msra.mxu0 %v30
  %154 = vmatprep.subr.mxu0 0.0
  %155 = vmatpush1.msra.mxu0 0.0
  %156 = vmatprep.subr.mxu0 0.0
  %157 = vmatpush1.msra.mxu0 0.0
  %158 = vmatprep.subr.mxu0 0.0
  %159 = vmatpush1.msra.mxu0 0.0
  %160 = vmatprep.subr.mxu0 0.0
  %161 = vmatpush1.msra.mxu0 0.0
  %162 = vmatprep.subr.mxu0 0.0
  %163 = vmatpush1.msra.mxu0 0.0
  %164 = vmatprep.subr.mxu0 0.0
  %165 = vmatpush1.msra.mxu0 0.0
  %166 = vmatprep.subr.mxu0 0.0
  %167 = vmatpush1.msra.mxu0 0.0
  %168 = vmatprep.subr.mxu0 0.0
  %169 = vmatpush1.msra.mxu0 0.0
  %170 = vmatprep.subr.mxu0 0.0
  %171 = vmatpush1.msra.mxu0 0.0
  %172 = vmatprep.subr.mxu0 0.0
  %173 = vmatpush1.msra.mxu0 0.0
  %174 = vmatprep.subr.mxu0 0.0
  %175 = vmatpush1.msra.mxu0 0.0
  %176 = vmatprep.subr.mxu0 0.0
  %177 = vmatpush1.msra.mxu0 0.0
  %178 = vmatprep.subr.mxu0 0.0
  %179 = vmatpush1.msra.mxu0 0.0
  %180 = vmatprep.subr.mxu0 0.0
  %181 = vmatpush1.msra.mxu0 0.0
  %182 = vmatprep.subr.mxu0 0.0
  %183 = vmatpush1.msra.mxu0 0.0
  %184 = vmatprep.subr.mxu0 0.0
  %185 = vmatpush1.msra.mxu0 0.0
  %186 = vmatprep.subr.mxu0 0.0
  %187 = vmatpush1.msra.mxu0 0.0
  %188 = vmatprep.subr.mxu0 0.0
  %189 = vmatpush1.msra.mxu0 0.0
  %190 = vmatprep.subr.mxu0 0.0
  %191 = vmatpush1.msra.mxu0 0.0
  %192 = vmatprep.subr.mxu0 0.0
  %193 = vmatpush1.msra.mxu0 0.0
  %194 = vmatprep.subr.mxu0 0.0
  %195 = vmatpush1.msra.mxu0 0.0
  %196 = vmatprep.subr.mxu0 0.0
  %197 = vmatpush1.msra.mxu0 0.0
  %198 = vmatprep.subr.mxu0 0.0
  %199 = vmatpush1.msra.mxu0 0.0
  %200 = vmatprep.subr.mxu0 0.0
  %201 = vmatpush1.msra.mxu0 0.0
  %202 = vmatprep.subr.mxu0 0.0
  %203 = vmatpush1.msra.mxu0 0.0
  %204 = vmatprep.subr.mxu0 0.0
  %205 = vmatpush1.msra.mxu0 0.0
  %206 = vmatprep.subr.mxu0 0.0
  %207 = vmatpush1.msra.mxu0 0.0
  %208 = vmatprep.subr.mxu0 0.0
  %209 = vmatpush1.msra.mxu0 0.0
  %210 = vmatprep.mubr.f32.mxu0 0.0
  %211 = vmatmul.mubr.f32.gmra.mrb[0].mxu0 %v144
  %v212 = vpop.f32.mrb[0].mxu0
  %v213 = vadd.f32 0.0, %v212
  %v214 = vpop.f32.mrb[0].mxu0
  %215 = vdwg.mxu0
  %216 = vset.pattern.permute.xlu0 1
  %217 = vperm.xlu0 %216, %v20
  %v218 = vpop.permute.xlu0 %217
  %v220 = vmul.f32 %v218, %v59
  %v221 = vadd.f32 %v220, %v66
  %222 = vmatprep.subr.mxu0 0.0
  %223 = vmatpush1.msra.mxu0 %v46
  %224 = vmatprep.subr.mxu0 0.0
  %225 = vmatpush1.msra.mxu0 %v47
  %226 = vmatprep.subr.mxu0 0.0
  %227 = vmatpush1.msra.mxu0 %v48
  %228 = vmatprep.subr.mxu0 0.0
  %229 = vmatpush1.msra.mxu0 %v49
  %230 = vmatprep.subr.mxu0 0.0
  %231 = vmatpush1.msra.mxu0 0.0
  %232 = vmatprep.subr.mxu0 0.0
  %233 = vmatpush1.msra.mxu0 0.0
  %234 = vmatprep.subr.mxu0 0.0
  %235 = vmatpush1.msra.mxu0 0.0
  %236 = vmatprep.subr.mxu0 0.0
  %237 = vmatpush1.msra.mxu0 0.0
  %238 = vmatprep.subr.mxu0 0.0
  %239 = vmatpush1.msra.mxu0 0.0
  %240 = vmatprep.subr.mxu0 0.0
  %241 = vmatpush1.msra.mxu0 0.0
  %242 = vmatprep.subr.mxu0 0.0
  %243 = vmatpush1.msra.mxu0 0.0
  %244 = vmatprep.subr.mxu0 0.0
  %245 = vmatpush1.msra.mxu0 0.0
  %246 = vmatprep.subr.mxu0 0.0
  %247 = vmatpush1.msra.mxu0 0.0
  %248 = vmatprep.subr.mxu0 0.0
  %249 = vmatpush1.msra.mxu0 0.0
  %250 = vmatprep.subr.mxu0 0.0
  %251 = vmatpush1.msra.mxu0 0.0
  %252 = vmatprep.subr.mxu0 0.0
  %253 = vmatpush1.msra.mxu0 0.0
  %254 = vmatprep.subr.mxu0 0.0
  %255 = vmatpush1.msra.mxu0 0.0
  %256 = vmatprep.subr.mxu0 0.0
  %257 = vmatpush1.msra.mxu0 0.0
  %258 = vmatprep.subr.mxu0 0.0
  %259 = vmatpush1.msra.mxu0 0.0
  %260 = vmatprep.subr.mxu0 0.0
  %261 = vmatpush1.msra.mxu0 0.0
  %262 = vmatprep.subr.mxu0 0.0
  %263 = vmatpush1.msra.mxu0 0.0
  %264 = vmatprep.subr.mxu0 0.0
  %265 = vmatpush1.msra.mxu0 0.0
  %266 = vmatprep.subr.mxu0 0.0
  %267 = vmatpush1.msra.mxu0 0.0
  %268 = vmatprep.subr.mxu0 0.0
  %269 = vmatpush1.msra.mxu0 0.0
  %270 = vmatprep.subr.mxu0 0.0
  %271 = vmatpush1.msra.mxu0 0.0
  %272 = vmatprep.subr.mxu0 0.0
  %273 = vmatpush1.msra.mxu0 0.0
  %274 = vmatprep.subr.mxu0 0.0
  %275 = vmatpush1.msra.mxu0 0.0
  %276 = vmatprep.subr.mxu0 0.0
  %277 = vmatpush1.msra.mxu0 0.0
  %278 = vmatprep.subr.mxu0 0.0
  %279 = vmatpush1.msra.mxu0 0.0
  %280 = vmatprep.subr.mxu0 0.0
  %281 = vmatpush1.msra.mxu0 0.0
  %282 = vmatprep.subr.mxu0 0.0
  %283 = vmatpush1.msra.mxu0 0.0
  %284 = vmatprep.subr.mxu0 0.0
  %285 = vmatpush1.msra.mxu0 0.0
  %286 = vmatprep.mubr.f32.mxu0 0.0
  %287 = vmatmul.mubr.f32.gmra.mrb[0].mxu0 %v144
  %v288 = vpop.f32.mrb[0].mxu0
  %v289 = vadd.f32 %v221, %v288
  %v290 = vpop.f32.mrb[0].mxu0
  %291 = vdwg.mxu0
  %v292 = vsub.f32 %v289, %v140
  %v294 = vsel %vm69, %v292, 0
  %296 = vmatprep.subr.mxu0 0.0
  %297 = vmatpush1.msra.mxu0 %v27
  %298 = vmatprep.subr.mxu0 0.0
  %299 = vmatpush1.msra.mxu0 %v28
  %300 = vmatprep.subr.mxu0 0.0
  %301 = vmatpush1.msra.mxu0 %v29
  %302 = vmatprep.subr.mxu0 0.0
  %303 = vmatpush1.msra.mxu0 %v30
  %304 = vmatprep.subr.mxu0 0.0
  %305 = vmatpush1.msra.mxu0 0.0
  %306 = vmatprep.subr.mxu0 0.0
  %307 = vmatpush1.msra.mxu0 0.0
  %308 = vmatprep.subr.mxu0 0.0
  %309 = vmatpush1.msra.mxu0 0.0
  %310 = vmatprep.subr.mxu0 0.0
  %311 = vmatpush1.msra.mxu0 0.0
  %312 = vmatprep.subr.mxu0 0.0
  %313 = vmatpush1.msra.mxu0 0.0
  %314 = vmatprep.subr.mxu0 0.0
  %315 = vmatpush1.msra.mxu0 0.0
  %316 = vmatprep.subr.mxu0 0.0
  %317 = vmatpush1.msra.mxu0 0.0
  %318 = vmatprep.subr.mxu0 0.0
  %319 = vmatpush1.msra.mxu0 0.0
  %320 = vmatprep.subr.mxu0 0.0
  %321 = vmatpush1.msra.mxu0 0.0
  %322 = vmatprep.subr.mxu0 0.0
  %323 = vmatpush1.msra.mxu0 0.0
  %324 = vmatprep.subr.mxu0 0.0
  %325 = vmatpush1.msra.mxu0 0.0
  %326 = vmatprep.subr.mxu0 0.0
  %327 = vmatpush1.msra.mxu0 0.0
  %328 = vmatprep.subr.mxu0 0.0
  %329 = vmatpush1.msra.mxu0 0.0
  %330 = vmatprep.subr.mxu0 0.0
  %331 = vmatpush1.msra.mxu0 0.0
  %332 = vmatprep.subr.mxu0 0.0
  %333 = vmatpush1.msra.mxu0 0.0
  %334 = vmatprep.subr.mxu0 0.0
  %335 = vmatpush1.msra.mxu0 0.0
  %336 = vmatprep.subr.mxu0 0.0
  %337 = vmatpush1.msra.mxu0 0.0
  %338 = vmatprep.subr.mxu0 0.0
  %339 = vmatpush1.msra.mxu0 0.0
  %340 = vmatprep.subr.mxu0 0.0
  %341 = vmatpush1.msra.mxu0 0.0
  %342 = vmatprep.subr.mxu0 0.0
  %343 = vmatpush1.msra.mxu0 0.0
  %344 = vmatprep.subr.mxu0 0.0
  %345 = vmatpush1.msra.mxu0 0.0
  %346 = vmatprep.subr.mxu0 0.0
  %347 = vmatpush1.msra.mxu0 0.0
  %348 = vmatprep.subr.mxu0 0.0
  %349 = vmatpush1.msra.mxu0 0.0
  %350 = vmatprep.subr.mxu0 0.0
  %351 = vmatpush1.msra.mxu0 0.0
  %352 = vmatprep.subr.mxu0 0.0
  %353 = vmatpush1.msra.mxu0 0.0
  %354 = vmatprep.subr.mxu0 0.0
  %355 = vmatpush1.msra.mxu0 0.0
  %356 = vmatprep.subr.mxu0 0.0
  %357 = vmatpush1.msra.mxu0 0.0
  %358 = vmatprep.subr.mxu0 0.0
  %359 = vmatpush1.msra.mxu0 0.0
  %360 = vmatprep.mubr.f32.mxu0 0.0
  %361 = vmatmul.mubr.f32.gmra.mrb[0].mxu0 %v294
  %v362 = vpop.f32.mrb[0].mxu0
  %v363 = vadd.f32 0.0, %v362
  %v364 = vpop.f32.mrb[0].mxu0
  %365 = vdwg.mxu0
  %366 = vset.pattern.permute.xlu0 2
  %367 = vperm.xlu0 %366, %v20
  %v368 = vpop.permute.xlu0 %367
  %v370 = vmul.f32 %v368, %v59
  %v371 = vadd.f32 %v370, %v66
  %v373 = vsel %vm69, %v289, 0
  %375 = vmatprep.subr.mxu0 0.0
  %376 = vmatpush1.msra.mxu0 %v46
  %377 = vmatprep.subr.mxu0 0.0
  %378 = vmatpush1.msra.mxu0 %v47
  %379 = vmatprep.subr.mxu0 0.0
  %380 = vmatpush1.msra.mxu0 %v48
  %381 = vmatprep.subr.mxu0 0.0
  %382 = vmatpush1.msra.mxu0 %v49
  %383 = vmatprep.subr.mxu0 0.0
  %384 = vmatpush1.msra.mxu0 0.0
  %385 = vmatprep.subr.mxu0 0.0
  %386 = vmatpush1.msra.mxu0 0.0
  %387 = vmatprep.subr.mxu0 0.0
  %388 = vmatpush1.msra.mxu0 0.0
  %389 = vmatprep.subr.mxu0 0.0
  %390 = vmatpush1.msra.mxu0 0.0
  %391 = vmatprep.subr.mxu0 0.0
  %392 = vmatpush1.msra.mxu0 0.0
  %393 = vmatprep.subr.mxu0 0.0
  %394 = vmatpush1.msra.mxu0 0.0
  %395 = vmatprep.subr.mxu0 0.0
  %396 = vmatpush1.msra.mxu0 0.0
  %397 = vmatprep.subr.mxu0 0.0
  %398 = vmatpush1.msra.mxu0 0.0
  %399 = vmatprep.subr.mxu0 0.0
  %400 = vmatpush1.msra.mxu0 0.0
  %401 = vmatprep.subr.mxu0 0.0
  %402 = vmatpush1.msra.mxu0 0.0
  %403 = vmatprep.subr.mxu0 0.0
  %404 = vmatpush1.msra.mxu0 0.0
  %405 = vmatprep.subr.mxu0 0.0
  %406 = vmatpush1.msra.mxu0 0.0
  %407 = vmatprep.subr.mxu0 0.0
  %408 = vmatpush1.msra.mxu0 0.0
  %409 = vmatprep.subr.mxu0 0.0
  %410 = vmatpush1.msra.mxu0 0.0
  %411 = vmatprep.subr.mxu0 0.0
  %412 = vmatpush1.msra.mxu0 0.0
  %413 = vmatprep.subr.mxu0 0.0
  %414 = vmatpush1.msra.mxu0 0.0
  %415 = vmatprep.subr.mxu0 0.0
  %416 = vmatpush1.msra.mxu0 0.0
  %417 = vmatprep.subr.mxu0 0.0
  %418 = vmatpush1.msra.mxu0 0.0
  %419 = vmatprep.subr.mxu0 0.0
  %420 = vmatpush1.msra.mxu0 0.0
  %421 = vmatprep.subr.mxu0 0.0
  %422 = vmatpush1.msra.mxu0 0.0
  %423 = vmatprep.subr.mxu0 0.0
  %424 = vmatpush1.msra.mxu0 0.0
  %425 = vmatprep.subr.mxu0 0.0
  %426 = vmatpush1.msra.mxu0 0.0
  %427 = vmatprep.subr.mxu0 0.0
  %428 = vmatpush1.msra.mxu0 0.0
  %429 = vmatprep.subr.mxu0 0.0
  %430 = vmatpush1.msra.mxu0 0.0
  %431 = vmatprep.subr.mxu0 0.0
  %432 = vmatpush1.msra.mxu0 0.0
  %433 = vmatprep.subr.mxu0 0.0
  %434 = vmatpush1.msra.mxu0 0.0
  %435 = vmatprep.subr.mxu0 0.0
  %436 = vmatpush1.msra.mxu0 0.0
  %437 = vmatprep.subr.mxu0 0.0
  %438 = vmatpush1.msra.mxu0 0.0
  %439 = vmatprep.mubr.f32.mxu0 0.0
  %440 = vmatmul.mubr.f32.gmra.mrb[0].mxu0 %v373
  %v441 = vpop.f32.mrb[0].mxu0
  %v442 = vadd.f32 %v371, %v441
  %v443 = vpop.f32.mrb[0].mxu0
  %444 = vdwg.mxu0
  %v445 = vsub.f32 %v442, %v289
  %v447 = vsel %vm69, %v445, 0
  %449 = vmatprep.subr.mxu0 0.0
  %450 = vmatpush1.msra.mxu0 %v27
  %451 = vmatprep.subr.mxu0 0.0
  %452 = vmatpush1.msra.mxu0 %v28
  %453 = vmatprep.subr.mxu0 0.0
  %454 = vmatpush1.msra.mxu0 %v29
  %455 = vmatprep.subr.mxu0 0.0
  %456 = vmatpush1.msra.mxu0 %v30
  %457 = vmatprep.subr.mxu0 0.0
  %458 = vmatpush1.msra.mxu0 0.0
  %459 = vmatprep.subr.mxu0 0.0
  %460 = vmatpush1.msra.mxu0 0.0
  %461 = vmatprep.subr.mxu0 0.0
  %462 = vmatpush1.msra.mxu0 0.0
  %463 = vmatprep.subr.mxu0 0.0
  %464 = vmatpush1.msra.mxu0 0.0
  %465 = vmatprep.subr.mxu0 0.0
  %466 = vmatpush1.msra.mxu0 0.0
  %467 = vmatprep.subr.mxu0 0.0
  %468 = vmatpush1.msra.mxu0 0.0
  %469 = vmatprep.subr.mxu0 0.0
  %470 = vmatpush1.msra.mxu0 0.0
  %471 = vmatprep.subr.mxu0 0.0
  %472 = vmatpush1.msra.mxu0 0.0
  %473 = vmatprep.subr.mxu0 0.0
  %474 = vmatpush1.msra.mxu0 0.0
  %475 = vmatprep.subr.mxu0 0.0
  %476 = vmatpush1.msra.mxu0 0.0
  %477 = vmatprep.subr.mxu0 0.0
  %478 = vmatpush1.msra.mxu0 0.0
  %479 = vmatprep.subr.mxu0 0.0
  %480 = vmatpush1.msra.mxu0 0.0
  %481 = vmatprep.subr.mxu0 0.0
  %482 = vmatpush1.msra.mxu0 0.0
  %483 = vmatprep.subr.mxu0 0.0
  %484 = vmatpush1.msra.mxu0 0.0
  %485 = vmatprep.subr.mxu0 0.0
  %486 = vmatpush1.msra.mxu0 0.0
  %487 = vmatprep.subr.mxu0 0.0
  %488 = vmatpush1.msra.mxu0 0.0
  %489 = vmatprep.subr.mxu0 0.0
  %490 = vmatpush1.msra.mxu0 0.0
  %491 = vmatprep.subr.mxu0 0.0
  %492 = vmatpush1.msra.mxu0 0.0
  %493 = vmatprep.subr.mxu0 0.0
  %494 = vmatpush1.msra.mxu0 0.0
  %495 = vmatprep.subr.mxu0 0.0
  %496 = vmatpush1.msra.mxu0 0.0
  %497 = vmatprep.subr.mxu0 0.0
  %498 = vmatpush1.msra.mxu0 0.0
  %499 = vmatprep.subr.mxu0 0.0
  %500 = vmatpush1.msra.mxu0 0.0
  %501 = vmatprep.subr.mxu0 0.0
  %502 = vmatpush1.msra.mxu0 0.0
  %503 = vmatprep.subr.mxu0 0.0
  %504 = vmatpush1.msra.mxu0 0.0
  %505 = vmatprep.subr.mxu0 0.0
  %506 = vmatpush1.msra.mxu0 0.0
  %507 = vmatprep.subr.mxu0 0.0
  %508 = vmatpush1.msra.mxu0 0.0
  %509 = vmatprep.subr.mxu0 0.0
  %510 = vmatpush1.msra.mxu0 0.0
  %511 = vmatprep.subr.mxu0 0.0
  %512 = vmatpush1.msra.mxu0 0.0
  %513 = vmatprep.mubr.f32.mxu0 0.0
  %514 = vmatmul.mubr.f32.gmra.mrb[0].mxu0 %v447
  %v515 = vpop.f32.mrb[0].mxu0
  %v516 = vadd.f32 0.0, %v515
  %v517 = vpop.f32.mrb[0].mxu0
  %518 = vdwg.mxu0
  %519 = vset.pattern.permute.xlu0 3
  %520 = vperm.xlu0 %519, %v20
  %v521 = vpop.permute.xlu0 %520
  %v523 = vmul.f32 %v521, %v59
  %v524 = vadd.f32 %v523, %v66
  %v526 = vsel %vm69, %v442, 0
  %528 = vmatprep.subr.mxu0 0.0
  %529 = vmatpush1.msra.mxu0 %v46
  %530 = vmatprep.subr.mxu0 0.0
  %531 = vmatpush1.msra.mxu0 %v47
  %532 = vmatprep.subr.mxu0 0.0
  %533 = vmatpush1.msra.mxu0 %v48
  %534 = vmatprep.subr.mxu0 0.0
  %535 = vmatpush1.msra.mxu0 %v49
  %536 = vmatprep.subr.mxu0 0.0
  %537 = vmatpush1.msra.mxu0 0.0
  %538 = vmatprep.subr.mxu0 0.0
  %539 = vmatpush1.msra.mxu0 0.0
  %540 = vmatprep.subr.mxu0 0.0
  %541 = vmatpush1.msra.mxu0 0.0
  %542 = vmatprep.subr.mxu0 0.0
  %543 = vmatpush1.msra.mxu0 0.0
  %544 = vmatprep.subr.mxu0 0.0
  %545 = vmatpush1.msra.mxu0 0.0
  %546 = vmatprep.subr.mxu0 0.0
  %547 = vmatpush1.msra.mxu0 0.0
  %548 = vmatprep.subr.mxu0 0.0
  %549 = vmatpush1.msra.mxu0 0.0
  %550 = vmatprep.subr.mxu0 0.0
  %551 = vmatpush1.msra.mxu0 0.0
  %552 = vmatprep.subr.mxu0 0.0
  %553 = vmatpush1.msra.mxu0 0.0
  %554 = vmatprep.subr.mxu0 0.0
  %555 = vmatpush1.msra.mxu0 0.0
  %556 = vmatprep.subr.mxu0 0.0
  %557 = vmatpush1.msra.mxu0 0.0
  %558 = vmatprep.subr.mxu0 0.0
  %559 = vmatpush1.msra.mxu0 0.0
  %560 = vmatprep.subr.mxu0 0.0
  %561 = vmatpush1.msra.mxu0 0.0
  %562 = vmatprep.subr.mxu0 0.0
  %563 = vmatpush1.msra.mxu0 0.0
  %564 = vmatprep.subr.mxu0 0.0
  %565 = vmatpush1.msra.mxu0 0.0
  %566 = vmatprep.subr.mxu0 0.0
  %567 = vmatpush1.msra.mxu0 0.0
  %568 = vmatprep.subr.mxu0 0.0
  %569 = vmatpush1.msra.mxu0 0.0
  %570 = vmatprep.subr.mxu0 0.0
  %571 = vmatpush1.msra.mxu0 0.0
  %572 = vmatprep.subr.mxu0 0.0
  %573 = vmatpush1.msra.mxu0 0.0
  %574 = vmatprep.subr.mxu0 0.0
  %575 = vmatpush1.msra.mxu0 0.0
  %576 = vmatprep.subr.mxu0 0.0
  %577 = vmatpush1.msra.mxu0 0.0
  %578 = vmatprep.subr.mxu0 0.0
  %579 = vmatpush1.msra.mxu0 0.0
  %580 = vmatprep.subr.mxu0 0.0
  %581 = vmatpush1.msra.mxu0 0.0
  %582 = vmatprep.subr.mxu0 0.0
  %583 = vmatpush1.msra.mxu0 0.0
  %584 = vmatprep.subr.mxu0 0.0
  %585 = vmatpush1.msra.mxu0 0.0
  %586 = vmatprep.subr.mxu0 0.0
  %587 = vmatpush1.msra.mxu0 0.0
  %588 = vmatprep.subr.mxu0 0.0
  %589 = vmatpush1.msra.mxu0 0.0
  %590 = vmatprep.subr.mxu0 0.0
  %591 = vmatpush1.msra.mxu0 0.0
  %592 = vmatprep.mubr.f32.mxu0 0.0
  %593 = vmatmul.mubr.f32.gmra.mrb[0].mxu0 %v526
  %v594 = vpop.f32.mrb[0].mxu0
  %v595 = vadd.f32 %v524, %v594
  %v596 = vpop.f32.mrb[0].mxu0
  %597 = vdwg.mxu0
  %v598 = vsub.f32 %v595, %v442
  %v600 = vsel %vm69, %v598, 0
  %602 = vmatprep.subr.mxu0 0.0
  %603 = vmatpush1.msra.mxu0 %v27
  %604 = vmatprep.subr.mxu0 0.0
  %605 = vmatpush1.msra.mxu0 %v28
  %606 = vmatprep.subr.mxu0 0.0
  %607 = vmatpush1.msra.mxu0 %v29
  %608 = vmatprep.subr.mxu0 0.0
  %609 = vmatpush1.msra.mxu0 %v30
  %610 = vmatprep.subr.mxu0 0.0
  %611 = vmatpush1.msra.mxu0 0.0
  %612 = vmatprep.subr.mxu0 0.0
  %613 = vmatpush1.msra.mxu0 0.0
  %614 = vmatprep.subr.mxu0 0.0
  %615 = vmatpush1.msra.mxu0 0.0
  %616 = vmatprep.subr.mxu0 0.0
  %617 = vmatpush1.msra.mxu0 0.0
  %618 = vmatprep.subr.mxu0 0.0
  %619 = vmatpush1.msra.mxu0 0.0
  %620 = vmatprep.subr.mxu0 0.0
  %621 = vmatpush1.msra.mxu0 0.0
  %622 = vmatprep.subr.mxu0 0.0
  %623 = vmatpush1.msra.mxu0 0.0
  %624 = vmatprep.subr.mxu0 0.0
  %625 = vmatpush1.msra.mxu0 0.0
  %626 = vmatprep.subr.mxu0 0.0
  %627 = vmatpush1.msra.mxu0 0.0
  %628 = vmatprep.subr.mxu0 0.0
  %629 = vmatpush1.msra.mxu0 0.0
  %630 = vmatprep.subr.mxu0 0.0
  %631 = vmatpush1.msra.mxu0 0.0
  %632 = vmatprep.subr.mxu0 0.0
  %633 = vmatpush1.msra.mxu0 0.0
  %634 = vmatprep.subr.mxu0 0.0
  %635 = vmatpush1.msra.mxu0 0.0
  %636 = vmatprep.subr.mxu0 0.0
  %637 = vmatpush1.msra.mxu0 0.0
  %638 = vmatprep.subr.mxu0 0.0
  %639 = vmatpush1.msra.mxu0 0.0
  %640 = vmatprep.subr.mxu0 0.0
  %641 = vmatpush1.msra.mxu0 0.0
  %642 = vmatprep.subr.mxu0 0.0
  %643 = vmatpush1.msra.mxu0 0.0
  %644 = vmatprep.subr.mxu0 0.0
  %645 = vmatpush1.msra.mxu0 0.0
  %646 = vmatprep.subr.mxu0 0.0
  %647 = vmatpush1.msra.mxu0 0.0
  %648 = vmatprep.subr.mxu0 0.0
  %649 = vmatpush1.msra.mxu0 0.0
  %650 = vmatprep.subr.mxu0 0.0
  %651 = vmatpush1.msra.mxu0 0.0
  %652 = vmatprep.subr.mxu0 0.0
  %653 = vmatpush1.msra.mxu0 0.0
  %654 = vmatprep.subr.mxu0 0.0
  %655 = vmatpush1.msra.mxu0 0.0
  %656 = vmatprep.subr.mxu0 0.0
  %657 = vmatpush1.msra.mxu0 0.0
  %658 = vmatprep.subr.mxu0 0.0
  %659 = vmatpush1.msra.mxu0 0.0
  %660 = vmatprep.subr.mxu0 0.0
  %661 = vmatpush1.msra.mxu0 0.0
  %662 = vmatprep.subr.mxu0 0.0
  %663 = vmatpush1.msra.mxu0 0.0
  %664 = vmatprep.subr.mxu0 0.0
  %665 = vmatpush1.msra.mxu0 0.0
  %666 = vmatprep.mubr.f32.mxu0 0.0
  %667 = vmatmul.mubr.f32.gmra.mrb[0].mxu0 %v600
  %v668 = vpop.f32.mrb[0].mxu0
  %v669 = vadd.f32 0.0, %v668
  %v670 = vpop.f32.mrb[0].mxu0
  %671 = vdwg.mxu0
  %672 = vset.pattern.permute.xlu0 4
  %673 = vperm.xlu0 %672, %v20
  %v674 = vpop.permute.xlu0 %673
  %v676 = vmul.f32 %v674, %v59
  %v677 = vadd.f32 %v676, %v66
  %v679 = vsel %vm69, %v595, 0
  %681 = vmatprep.subr.mxu0 0.0
  %682 = vmatpush1.msra.mxu0 %v46
  %683 = vmatprep.subr.mxu0 0.0
  %684 = vmatpush1.msra.mxu0 %v47
  %685 = vmatprep.subr.mxu0 0.0
  %686 = vmatpush1.msra.mxu0 %v48
  %687 = vmatprep.subr.mxu0 0.0
  %688 = vmatpush1.msra.mxu0 %v49
  %689 = vmatprep.subr.mxu0 0.0
  %690 = vmatpush1.msra.mxu0 0.0
  %691 = vmatprep.subr.mxu0 0.0
  %692 = vmatpush1.msra.mxu0 0.0
  %693 = vmatprep.subr.mxu0 0.0
  %694 = vmatpush1.msra.mxu0 0.0
  %695 = vmatprep.subr.mxu0 0.0
  %696 = vmatpush1.msra.mxu0 0.0
  %697 = vmatprep.subr.mxu0 0.0
  %698 = vmatpush1.msra.mxu0 0.0
  %699 = vmatprep.subr.mxu0 0.0
  %700 = vmatpush1.msra.mxu0 0.0
  %701 = vmatprep.subr.mxu0 0.0
  %702 = vmatpush1.msra.mxu0 0.0
  %703 = vmatprep.subr.mxu0 0.0
  %704 = vmatpush1.msra.mxu0 0.0
  %705 = vmatprep.subr.mxu0 0.0
  %706 = vmatpush1.msra.mxu0 0.0
  %707 = vmatprep.subr.mxu0 0.0
  %708 = vmatpush1.msra.mxu0 0.0
  %709 = vmatprep.subr.mxu0 0.0
  %710 = vmatpush1.msra.mxu0 0.0
  %711 = vmatprep.subr.mxu0 0.0
  %712 = vmatpush1.msra.mxu0 0.0
  %713 = vmatprep.subr.mxu0 0.0
  %714 = vmatpush1.msra.mxu0 0.0
  %715 = vmatprep.subr.mxu0 0.0
  %716 = vmatpush1.msra.mxu0 0.0
  %717 = vmatprep.subr.mxu0 0.0
  %718 = vmatpush1.msra.mxu0 0.0
  %719 = vmatprep.subr.mxu0 0.0
  %720 = vmatpush1.msra.mxu0 0.0
  %721 = vmatprep.subr.mxu0 0.0
  %722 = vmatpush1.msra.mxu0 0.0
  %723 = vmatprep.subr.mxu0 0.0
  %724 = vmatpush1.msra.mxu0 0.0
  %725 = vmatprep.subr.mxu0 0.0
  %726 = vmatpush1.msra.mxu0 0.0
  %727 = vmatprep.subr.mxu0 0.0
  %728 = vmatpush1.msra.mxu0 0.0
  %729 = vmatprep.subr.mxu0 0.0
  %730 = vmatpush1.msra.mxu0 0.0
  %731 = vmatprep.subr.mxu0 0.0
  %732 = vmatpush1.msra.mxu0 0.0
  %733 = vmatprep.subr.mxu0 0.0
  %734 = vmatpush1.msra.mxu0 0.0
  %735 = vmatprep.subr.mxu0 0.0
  %736 = vmatpush1.msra.mxu0 0.0
  %737 = vmatprep.subr.mxu0 0.0
  %738 = vmatpush1.msra.mxu0 0.0
  %739 = vmatprep.subr.mxu0 0.0
  %740 = vmatpush1.msra.mxu0 0.0
  %741 = vmatprep.subr.mxu0 0.0
  %742 = vmatpush1.msra.mxu0 0.0
  %743 = vmatprep.subr.mxu0 0.0
  %744 = vmatpush1.msra.mxu0 0.0
  %745 = vmatprep.mubr.f32.mxu0 0.0
  %746 = vmatmul.mubr.f32.gmra.mrb[0].mxu0 %v679
  %v747 = vpop.f32.mrb[0].mxu0
  %v748 = vadd.f32 %v677, %v747
  %v749 = vpop.f32.mrb[0].mxu0
  %750 = vdwg.mxu0
  %v751 = vsub.f32 %v748, %v595
  %v753 = vsel %vm69, %v751, 0
  %755 = vmatprep.subr.mxu0 0.0
  %756 = vmatpush1.msra.mxu0 %v27
  %757 = vmatprep.subr.mxu0 0.0
  %758 = vmatpush1.msra.mxu0 %v28
  %759 = vmatprep.subr.mxu0 0.0
  %760 = vmatpush1.msra.mxu0 %v29
  %761 = vmatprep.subr.mxu0 0.0
  %762 = vmatpush1.msra.mxu0 %v30
  %763 = vmatprep.subr.mxu0 0.0
  %764 = vmatpush1.msra.mxu0 0.0
  %765 = vmatprep.subr.mxu0 0.0
  %766 = vmatpush1.msra.mxu0 0.0
  %767 = vmatprep.subr.mxu0 0.0
  %768 = vmatpush1.msra.mxu0 0.0
  %769 = vmatprep.subr.mxu0 0.0
  %770 = vmatpush1.msra.mxu0 0.0
  %771 = vmatprep.subr.mxu0 0.0
  %772 = vmatpush1.msra.mxu0 0.0
  %773 = vmatprep.subr.mxu0 0.0
  %774 = vmatpush1.msra.mxu0 0.0
  %775 = vmatprep.subr.mxu0 0.0
  %776 = vmatpush1.msra.mxu0 0.0
  %777 = vmatprep.subr.mxu0 0.0
  %778 = vmatpush1.msra.mxu0 0.0
  %779 = vmatprep.subr.mxu0 0.0
  %780 = vmatpush1.msra.mxu0 0.0
  %781 = vmatprep.subr.mxu0 0.0
  %782 = vmatpush1.msra.mxu0 0.0
  %783 = vmatprep.subr.mxu0 0.0
  %784 = vmatpush1.msra.mxu0 0.0
  %785 = vmatprep.subr.mxu0 0.0
  %786 = vmatpush1.msra.mxu0 0.0
  %787 = vmatprep.subr.mxu0 0.0
  %788 = vmatpush1.msra.mxu0 0.0
  %789 = vmatprep.subr.mxu0 0.0
  %790 = vmatpush1.msra.mxu0 0.0
  %791 = vmatprep.subr.mxu0 0.0
  %792 = vmatpush1.msra.mxu0 0.0
  %793 = vmatprep.subr.mxu0 0.0
  %794 = vmatpush1.msra.mxu0 0.0
  %795 = vmatprep.subr.mxu0 0.0
  %796 = vmatpush1.msra.mxu0 0.0
  %797 = vmatprep.subr.mxu0 0.0
  %798 = vmatpush1.msra.mxu0 0.0
  %799 = vmatprep.subr.mxu0 0.0
  %800 = vmatpush1.msra.mxu0 0.0
  %801 = vmatprep.subr.mxu0 0.0
  %802 = vmatpush1.msra.mxu0 0.0
  %803 = vmatprep.subr.mxu0 0.0
  %804 = vmatpush1.msra.mxu0 0.0
  %805 = vmatprep.subr.mxu0 0.0
  %806 = vmatpush1.msra.mxu0 0.0
  %807 = vmatprep.subr.mxu0 0.0
  %808 = vmatpush1.msra.mxu0 0.0
  %809 = vmatprep.subr.mxu0 0.0
  %810 = vmatpush1.msra.mxu0 0.0
  %811 = vmatprep.subr.mxu0 0.0
  %812 = vmatpush1.msra.mxu0 0.0
  %813 = vmatprep.subr.mxu0 0.0
  %814 = vmatpush1.msra.mxu0 0.0
  %815 = vmatprep.subr.mxu0 0.0
  %816 = vmatpush1.msra.mxu0 0.0
  %817 = vmatprep.subr.mxu0 0.0
  %818 = vmatpush1.msra.mxu0 0.0
  %819 = vmatprep.mubr.f32.mxu0 0.0
  %820 = vmatmul.mubr.f32.gmra.mrb[0].mxu0 %v753
  %v821 = vpop.f32.mrb[0].mxu0
  %v822 = vadd.f32 0.0, %v821
  %v823 = vpop.f32.mrb[0].mxu0
  %824 = vdwg.mxu0
  %825 = vset.pattern.permute.xlu0 5
  %826 = vperm.xlu0 %825, %v20
  %v827 = vpop.permute.xlu0 %826
  %v829 = vmul.f32 %v827, %v59
  %v830 = vadd.f32 %v829, %v66
  %v832 = vsel %vm69, %v748, 0
  %834 = vmatprep.subr.mxu0 0.0
  %835 = vmatpush1.msra.mxu0 %v46
  %836 = vmatprep.subr.mxu0 0.0
  %837 = vmatpush1.msra.mxu0 %v47
  %838 = vmatprep.subr.mxu0 0.0
  %839 = vmatpush1.msra.mxu0 %v48
  %840 = vmatprep.subr.mxu0 0.0
  %841 = vmatpush1.msra.mxu0 %v49
  %842 = vmatprep.subr.mxu0 0.0
  %843 = vmatpush1.msra.mxu0 0.0
  %844 = vmatprep.subr.mxu0 0.0
  %845 = vmatpush1.msra.mxu0 0.0
  %846 = vmatprep.subr.mxu0 0.0
  %847 = vmatpush1.msra.mxu0 0.0
  %848 = vmatprep.subr.mxu0 0.0
  %849 = vmatpush1.msra.mxu0 0.0
  %850 = vmatprep.subr.mxu0 0.0
  %851 = vmatpush1.msra.mxu0 0.0
  %852 = vmatprep.subr.mxu0 0.0
  %853 = vmatpush1.msra.mxu0 0.0
  %854 = vmatprep.subr.mxu0 0.0
  %855 = vmatpush1.msra.mxu0 0.0
  %856 = vmatprep.subr.mxu0 0.0
  %857 = vmatpush1.msra.mxu0 0.0
  %858 = vmatprep.subr.mxu0 0.0
  %859 = vmatpush1.msra.mxu0 0.0
  %860 = vmatprep.subr.mxu0 0.0
  %861 = vmatpush1.msra.mxu0 0.0
  %862 = vmatprep.subr.mxu0 0.0
  %863 = vmatpush1.msra.mxu0 0.0
  %864 = vmatprep.subr.mxu0 0.0
  %865 = vmatpush1.msra.mxu0 0.0
  %866 = vmatprep.subr.mxu0 0.0
  %867 = vmatpush1.msra.mxu0 0.0
  %868 = vmatprep.subr.mxu0 0.0
  %869 = vmatpush1.msra.mxu0 0.0
  %870 = vmatprep.subr.mxu0 0.0
  %871 = vmatpush1.msra.mxu0 0.0
  %872 = vmatprep.subr.mxu0 0.0
  %873 = vmatpush1.msra.mxu0 0.0
  %874 = vmatprep.subr.mxu0 0.0
  %875 = vmatpush1.msra.mxu0 0.0
  %876 = vmatprep.subr.mxu0 0.0
  %877 = vmatpush1.msra.mxu0 0.0
  %878 = vmatprep.subr.mxu0 0.0
  %879 = vmatpush1.msra.mxu0 0.0
  %880 = vmatprep.subr.mxu0 0.0
  %881 = vmatpush1.msra.mxu0 0.0
  %882 = vmatprep.subr.mxu0 0.0
  %883 = vmatpush1.msra.mxu0 0.0
  %884 = vmatprep.subr.mxu0 0.0
  %885 = vmatpush1.msra.mxu0 0.0
  %886 = vmatprep.subr.mxu0 0.0
  %887 = vmatpush1.msra.mxu0 0.0
  %888 = vmatprep.subr.mxu0 0.0
  %889 = vmatpush1.msra.mxu0 0.0
  %890 = vmatprep.subr.mxu0 0.0
  %891 = vmatpush1.msra.mxu0 0.0
  %892 = vmatprep.subr.mxu0 0.0
  %893 = vmatpush1.msra.mxu0 0.0
  %894 = vmatprep.subr.mxu0 0.0
  %895 = vmatpush1.msra.mxu0 0.0
  %896 = vmatprep.subr.mxu0 0.0
  %897 = vmatpush1.msra.mxu0 0.0
  %898 = vmatprep.mubr.f32.mxu0 0.0
  %899 = vmatmul.mubr.f32.gmra.mrb[0].mxu0 %v832
  %v900 = vpop.f32.mrb[0].mxu0
  %v901 = vadd.f32 %v830, %v900
  %v902 = vpop.f32.mrb[0].mxu0
  %903 = vdwg.mxu0
  %v904 = vsub.f32 %v901, %v748
  %v906 = vsel %vm69, %v904, 0
  %908 = vmatprep.subr.mxu0 0.0
  %909 = vmatpush1.msra.mxu0 %v27
  %910 = vmatprep.subr.mxu0 0.0
  %911 = vmatpush1.msra.mxu0 %v28
  %912 = vmatprep.subr.mxu0 0.0
  %913 = vmatpush1.msra.mxu0 %v29
  %914 = vmatprep.subr.mxu0 0.0
  %915 = vmatpush1.msra.mxu0 %v30
  %916 = vmatprep.subr.mxu0 0.0
  %917 = vmatpush1.msra.mxu0 0.0
  %918 = vmatprep.subr.mxu0 0.0
  %919 = vmatpush1.msra.mxu0 0.0
  %920 = vmatprep.subr.mxu0 0.0
  %921 = vmatpush1.msra.mxu0 0.0
  %922 = vmatprep.subr.mxu0 0.0
  %923 = vmatpush1.msra.mxu0 0.0
  %924 = vmatprep.subr.mxu0 0.0
  %925 = vmatpush1.msra.mxu0 0.0
  %926 = vmatprep.subr.mxu0 0.0
  %927 = vmatpush1.msra.mxu0 0.0
  %928 = vmatprep.subr.mxu0 0.0
  %929 = vmatpush1.msra.mxu0 0.0
  %930 = vmatprep.subr.mxu0 0.0
  %931 = vmatpush1.msra.mxu0 0.0
  %932 = vmatprep.subr.mxu0 0.0
  %933 = vmatpush1.msra.mxu0 0.0
  %934 = vmatprep.subr.mxu0 0.0
  %935 = vmatpush1.msra.mxu0 0.0
  %936 = vmatprep.subr.mxu0 0.0
  %937 = vmatpush1.msra.mxu0 0.0
  %938 = vmatprep.subr.mxu0 0.0
  %939 = vmatpush1.msra.mxu0 0.0
  %940 = vmatprep.subr.mxu0 0.0
  %941 = vmatpush1.msra.mxu0 0.0
  %942 = vmatprep.subr.mxu0 0.0
  %943 = vmatpush1.msra.mxu0 0.0
  %944 = vmatprep.subr.mxu0 0.0
  %945 = vmatpush1.msra.mxu0 0.0
  %946 = vmatprep.subr.mxu0 0.0
  %947 = vmatpush1.msra.mxu0 0.0
  %948 = vmatprep.subr.mxu0 0.0
  %949 = vmatpush1.msra.mxu0 0.0
  %950 = vmatprep.subr.mxu0 0.0
  %951 = vmatpush1.msra.mxu0 0.0
  %952 = vmatprep.subr.mxu0 0.0
  %953 = vmatpush1.msra.mxu0 0.0
  %954 = vmatprep.subr.mxu0 0.0
  %955 = vmatpush1.msra.mxu0 0.0
  %956 = vmatprep.subr.mxu0 0.0
  %957 = vmatpush1.msra.mxu0 0.0
  %958 = vmatprep.subr.mxu0 0.0
  %959 = vmatpush1.msra.mxu0 0.0
  %960 = vmatprep.subr.mxu0 0.0
  %961 = vmatpush1.msra.mxu0 0.0
  %962 = vmatprep.subr.mxu0 0.0
  %963 = vmatpush1.msra.mxu0 0.0
  %964 = vmatprep.subr.mxu0 0.0
  %965 = vmatpush1.msra.mxu0 0.0
  %966 = vmatprep.subr.mxu0 0.0
  %967 = vmatpush1.msra.mxu0 0.0
  %968 = vmatprep.subr.mxu0 0.0
  %969 = vmatpush1.msra.mxu0 0.0
  %970 = vmatprep.subr.mxu0 0.0
  %971 = vmatpush1.msra.mxu0 0.0
  %972 = vmatprep.mubr.f32.mxu0 0.0
  %973 = vmatmul.mubr.f32.gmra.mrb[0].mxu0 %v906
  %v974 = vpop.f32.mrb[0].mxu0
  %v975 = vadd.f32 0.0, %v974
  %v976 = vpop.f32.mrb[0].mxu0
  %977 = vdwg.mxu0
  %978 = vset.pattern.permute.xlu0 6
  %979 = vperm.xlu0 %978, %v20
  %v980 = vpop.permute.xlu0 %979
  %v982 = vmul.f32 %v980, %v59
  %v983 = vadd.f32 %v982, %v66
  %v985 = vsel %vm69, %v901, 0
  %987 = vmatprep.subr.mxu0 0.0
  %988 = vmatpush1.msra.mxu0 %v46
  %989 = vmatprep.subr.mxu0 0.0
  %990 = vmatpush1.msra.mxu0 %v47
  %991 = vmatprep.subr.mxu0 0.0
  %992 = vmatpush1.msra.mxu0 %v48
  %993 = vmatprep.subr.mxu0 0.0
  %994 = vmatpush1.msra.mxu0 %v49
  %995 = vmatprep.subr.mxu0 0.0
  %996 = vmatpush1.msra.mxu0 0.0
  %997 = vmatprep.subr.mxu0 0.0
  %998 = vmatpush1.msra.mxu0 0.0
  %999 = vmatprep.subr.mxu0 0.0
  %1000 = vmatpush1.msra.mxu0 0.0
  %1001 = vmatprep.subr.mxu0 0.0
  %1002 = vmatpush1.msra.mxu0 0.0
  %1003 = vmatprep.subr.mxu0 0.0
  %1004 = vmatpush1.msra.mxu0 0.0
  %1005 = vmatprep.subr.mxu0 0.0
  %1006 = vmatpush1.msra.mxu0 0.0
  %1007 = vmatprep.subr.mxu0 0.0
  %1008 = vmatpush1.msra.mxu0 0.0
  %1009 = vmatprep.subr.mxu0 0.0
  %1010 = vmatpush1.msra.mxu0 0.0
  %1011 = vmatprep.subr.mxu0 0.0
  %1012 = vmatpush1.msra.mxu0 0.0
  %1013 = vmatprep.subr.mxu0 0.0
  %1014 = vmatpush1.msra.mxu0 0.0
  %1015 = vmatprep.subr.mxu0 0.0
  %1016 = vmatpush1.msra.mxu0 0.0
  %1017 = vmatprep.subr.mxu0 0.0
  %1018 = vmatpush1.msra.mxu0 0.0
  %1019 = vmatprep.subr.mxu0 0.0
  %1020 = vmatpush1.msra.mxu0 0.0
  %1021 = vmatprep.subr.mxu0 0.0
  %1022 = vmatpush1.msra.mxu0 0.0
  %1023 = vmatprep.subr.mxu0 0.0
  %1024 = vmatpush1.msra.mxu0 0.0
  %1025 = vmatprep.subr.mxu0 0.0
  %1026 = vmatpush1.msra.mxu0 0.0
  %1027 = vmatprep.subr.mxu0 0.0
  %1028 = vmatpush1.msra.mxu0 0.0
  %1029 = vmatprep.subr.mxu0 0.0
  %1030 = vmatpush1.msra.mxu0 0.0
  %1031 = vmatprep.subr.mxu0 0.0
  %1032 = vmatpush1.msra.mxu0 0.0
  %1033 = vmatprep.subr.mxu0 0.0
  %1034 = vmatpush1.msra.mxu0 0.0
  %1035 = vmatprep.subr.mxu0 0.0
  %1036 = vmatpush1.msra.mxu0 0.0
  %1037 = vmatprep.subr.mxu0 0.0
  %1038 = vmatpush1.msra.mxu0 0.0
  %1039 = vmatprep.subr.mxu0 0.0
  %1040 = vmatpush1.msra.mxu0 0.0
  %1041 = vmatprep.subr.mxu0 0.0
  %1042 = vmatpush1.msra.mxu0 0.0
  %1043 = vmatprep.subr.mxu0 0.0
  %1044 = vmatpush1.msra.mxu0 0.0
  %1045 = vmatprep.subr.mxu0 0.0
  %1046 = vmatpush1.msra.mxu0 0.0
  %1047 = vmatprep.subr.mxu0 0.0
  %1048 = vmatpush1.msra.mxu0 0.0
  %1049 = vmatprep.subr.mxu0 0.0
  %1050 = vmatpush1.msra.mxu0 0.0
  %1051 = vmatprep.mubr.f32.mxu0 0.0
  %1052 = vmatmul.mubr.f32.gmra.mrb[0].mxu0 %v985
  %v1053 = vpop.f32.mrb[0].mxu0
  %v1054 = vadd.f32 %v983, %v1053
  %v1055 = vpop.f32.mrb[0].mxu0
  %1056 = vdwg.mxu0
  %v1057 = vsub.f32 %v1054, %v901
  %v1059 = vsel %vm69, %v1057, 0
  %1061 = vmatprep.subr.mxu0 0.0
  %1062 = vmatpush1.msra.mxu0 %v27
  %1063 = vmatprep.subr.mxu0 0.0
  %1064 = vmatpush1.msra.mxu0 %v28
  %1065 = vmatprep.subr.mxu0 0.0
  %1066 = vmatpush1.msra.mxu0 %v29
  %1067 = vmatprep.subr.mxu0 0.0
  %1068 = vmatpush1.msra.mxu0 %v30
  %1069 = vmatprep.subr.mxu0 0.0
  %1070 = vmatpush1.msra.mxu0 0.0
  %1071 = vmatprep.subr.mxu0 0.0
  %1072 = vmatpush1.msra.mxu0 0.0
  %1073 = vmatprep.subr.mxu0 0.0
  %1074 = vmatpush1.msra.mxu0 0.0
  %1075 = vmatprep.subr.mxu0 0.0
  %1076 = vmatpush1.msra.mxu0 0.0
  %1077 = vmatprep.subr.mxu0 0.0
  %1078 = vmatpush1.msra.mxu0 0.0
  %1079 = vmatprep.subr.mxu0 0.0
  %1080 = vmatpush1.msra.mxu0 0.0
  %1081 = vmatprep.subr.mxu0 0.0
  %1082 = vmatpush1.msra.mxu0 0.0
  %1083 = vmatprep.subr.mxu0 0.0
  %1084 = vmatpush1.msra.mxu0 0.0
  %1085 = vmatprep.subr.mxu0 0.0
  %1086 = vmatpush1.msra.mxu0 0.0
  %1087 = vmatprep.subr.mxu0 0.0
  %1088 = vmatpush1.msra.mxu0 0.0
  %1089 = vmatprep.subr.mxu0 0.0
  %1090 = vmatpush1.msra.mxu0 0.0
  %1091 = vmatprep.subr.mxu0 0.0
  %1092 = vmatpush1.msra.mxu0 0.0
  %1093 = vmatprep.subr.mxu0 0.0
  %1094 = vmatpush1.msra.mxu0 0.0
  %1095 = vmatprep.subr.mxu0 0.0
  %1096 = vmatpush1.msra.mxu0 0.0
  %1097 = vmatprep.subr.mxu0 0.0
  %1098 = vmatpush1.msra.mxu0 0.0
  %1099 = vmatprep.subr.mxu0 0.0
  %1100 = vmatpush1.msra.mxu0 0.0
  %1101 = vmatprep.subr.mxu0 0.0
  %1102 = vmatpush1.msra.mxu0 0.0
  %1103 = vmatprep.subr.mxu0 0.0
  %1104 = vmatpush1.msra.mxu0 0.0
  %1105 = vmatprep.subr.mxu0 0.0
  %1106 = vmatpush1.msra.mxu0 0.0
  %1107 = vmatprep.subr.mxu0 0.0
  %1108 = vmatpush1.msra.mxu0 0.0
  %1109 = vmatprep.subr.mxu0 0.0
  %1110 = vmatpush1.msra.mxu0 0.0
  %1111 = vmatprep.subr.mxu0 0.0
  %1112 = vmatpush1.msra.mxu0 0.0
  %1113 = vmatprep.subr.mxu0 0.0
  %1114 = vmatpush1.msra.mxu0 0.0
  %1115 = vmatprep.subr.mxu0 0.0
  %1116 = vmatpush1.msra.mxu0 0.0
  %1117 = vmatprep.subr.mxu0 0.0
  %1118 = vmatpush1.msra.mxu0 0.0
  %1119 = vmatprep.subr.mxu0 0.0
  %1120 = vmatpush1.msra.mxu0 0.0
  %1121 = vmatprep.subr.mxu0 0.0
  %1122 = vmatpush1.msra.mxu0 0.0
  %1123 = vmatprep.subr.mxu0 0.0
  %1124 = vmatpush1.msra.mxu0 0.0
  %1125 = vmatprep.mubr.f32.mxu0 0.0
  %1126 = vmatmul.mubr.f32.gmra.mrb[0].mxu0 %v1059
  %v1127 = vpop.f32.mrb[0].mxu0
  %v1128 = vadd.f32 0.0, %v1127
  %v1129 = vpop.f32.mrb[0].mxu0
  %1130 = vdwg.mxu0
  %1131 = vset.pattern.permute.xlu0 7
  %1132 = vperm.xlu0 %1131, %v20
  %v1133 = vpop.permute.xlu0 %1132
  %v1135 = vmul.f32 %v1133, %v59
  %v1136 = vadd.f32 %v1135, %v66
  %v1138 = vsel %vm69, %v1054, 0
  %1140 = vmatprep.subr.mxu0 0.0
  %1141 = vmatpush1.msra.mxu0 %v46
  %1142 = vmatprep.subr.mxu0 0.0
  %1143 = vmatpush1.msra.mxu0 %v47
  %1144 = vmatprep.subr.mxu0 0.0
  %1145 = vmatpush1.msra.mxu0 %v48
  %1146 = vmatprep.subr.mxu0 0.0
  %1147 = vmatpush1.msra.mxu0 %v49
  %1148 = vmatprep.subr.mxu0 0.0
  %1149 = vmatpush1.msra.mxu0 0.0
  %1150 = vmatprep.subr.mxu0 0.0
  %1151 = vmatpush1.msra.mxu0 0.0
  %1152 = vmatprep.subr.mxu0 0.0
  %1153 = vmatpush1.msra.mxu0 0.0
  %1154 = vmatprep.subr.mxu0 0.0
  %1155 = vmatpush1.msra.mxu0 0.0
  %1156 = vmatprep.subr.mxu0 0.0
  %1157 = vmatpush1.msra.mxu0 0.0
  %1158 = vmatprep.subr.mxu0 0.0
  %1159 = vmatpush1.msra.mxu0 0.0
  %1160 = vmatprep.subr.mxu0 0.0
  %1161 = vmatpush1.msra.mxu0 0.0
  %1162 = vmatprep.subr.mxu0 0.0
  %1163 = vmatpush1.msra.mxu0 0.0
  %1164 = vmatprep.subr.mxu0 0.0
  %1165 = vmatpush1.msra.mxu0 0.0
  %1166 = vmatprep.subr.mxu0 0.0
  %1167 = vmatpush1.msra.mxu0 0.0
  %1168 = vmatprep.subr.mxu0 0.0
  %1169 = vmatpush1.msra.mxu0 0.0
  %1170 = vmatprep.subr.mxu0 0.0
  %1171 = vmatpush1.msra.mxu0 0.0
  %1172 = vmatprep.subr.mxu0 0.0
  %1173 = vmatpush1.msra.mxu0 0.0
  %1174 = vmatprep.subr.mxu0 0.0
  %1175 = vmatpush1.msra.mxu0 0.0
  %1176 = vmatprep.subr.mxu0 0.0
  %1177 = vmatpush1.msra.mxu0 0.0
  %1178 = vmatprep.subr.mxu0 0.0
  %1179 = vmatpush1.msra.mxu0 0.0
  %1180 = vmatprep.subr.mxu0 0.0
  %1181 = vmatpush1.msra.mxu0 0.0
  %1182 = vmatprep.subr.mxu0 0.0
  %1183 = vmatpush1.msra.mxu0 0.0
  %1184 = vmatprep.subr.mxu0 0.0
  %1185 = vmatpush1.msra.mxu0 0.0
  %1186 = vmatprep.subr.mxu0 0.0
  %1187 = vmatpush1.msra.mxu0 0.0
  %1188 = vmatprep.subr.mxu0 0.0
  %1189 = vmatpush1.msra.mxu0 0.0
  %1190 = vmatprep.subr.mxu0 0.0
  %1191 = vmatpush1.msra.mxu0 0.0
  %1192 = vmatprep.subr.mxu0 0.0
  %1193 = vmatpush1.msra.mxu0 0.0
  %1194 = vmatprep.subr.mxu0 0.0
  %1195 = vmatpush1.msra.mxu0 0.0
  %1196 = vmatprep.subr.mxu0 0.0
  %1197 = vmatpush1.msra.mxu0 0.0
  %1198 = vmatprep.subr.mxu0 0.0
  %1199 = vmatpush1.msra.mxu0 0.0
  %1200 = vmatprep.subr.mxu0 0.0
  %1201 = vmatpush1.msra.mxu0 0.0
  %1202 = vmatprep.subr.mxu0 0.0
  %1203 = vmatpush1.msra.mxu0 0.0
  %1204 = vmatprep.mubr.f32.mxu0 0.0
  %1205 = vmatmul.mubr.f32.gmra.mrb[0].mxu0 %v1138
  %v1206 = vpop.f32.mrb[0].mxu0
  %v1207 = vadd.f32 %v1136, %v1206
  %v1208 = vpop.f32.mrb[0].mxu0
  %1209 = vdwg.mxu0
  %v1210 = vsub.f32 %v1207, %v1054
  %v1212 = vsel %vm69, %v1210, 0
  %1214 = vmatprep.subr.mxu0 0.0
  %1215 = vmatpush1.msra.mxu0 %v27
  %1216 = vmatprep.subr.mxu0 0.0
  %1217 = vmatpush1.msra.mxu0 %v28
  %1218 = vmatprep.subr.mxu0 0.0
  %1219 = vmatpush1.msra.mxu0 %v29
  %1220 = vmatprep.subr.mxu0 0.0
  %1221 = vmatpush1.msra.mxu0 %v30
  %1222 = vmatprep.subr.mxu0 0.0
  %1223 = vmatpush1.msra.mxu0 0.0
  %1224 = vmatprep.subr.mxu0 0.0
  %1225 = vmatpush1.msra.mxu0 0.0
  %1226 = vmatprep.subr.mxu0 0.0
  %1227 = vmatpush1.msra.mxu0 0.0
  %1228 = vmatprep.subr.mxu0 0.0
  %1229 = vmatpush1.msra.mxu0 0.0
  %1230 = vmatprep.subr.mxu0 0.0
  %1231 = vmatpush1.msra.mxu0 0.0
  %1232 = vmatprep.subr.mxu0 0.0
  %1233 = vmatpush1.msra.mxu0 0.0
  %1234 = vmatprep.subr.mxu0 0.0
  %1235 = vmatpush1.msra.mxu0 0.0
  %1236 = vmatprep.subr.mxu0 0.0
  %1237 = vmatpush1.msra.mxu0 0.0
  %1238 = vmatprep.subr.mxu0 0.0
  %1239 = vmatpush1.msra.mxu0 0.0
  %1240 = vmatprep.subr.mxu0 0.0
  %1241 = vmatpush1.msra.mxu0 0.0
  %1242 = vmatprep.subr.mxu0 0.0
  %1243 = vmatpush1.msra.mxu0 0.0
  %1244 = vmatprep.subr.mxu0 0.0
  %1245 = vmatpush1.msra.mxu0 0.0
  %1246 = vmatprep.subr.mxu0 0.0
  %1247 = vmatpush1.msra.mxu0 0.0
  %1248 = vmatprep.subr.mxu0 0.0
  %1249 = vmatpush1.msra.mxu0 0.0
  %1250 = vmatprep.subr.mxu0 0.0
  %1251 = vmatpush1.msra.mxu0 0.0
  %1252 = vmatprep.subr.mxu0 0.0
  %1253 = vmatpush1.msra.mxu0 0.0
  %1254 = vmatprep.subr.mxu0 0.0
  %1255 = vmatpush1.msra.mxu0 0.0
  %1256 = vmatprep.subr.mxu0 0.0
  %1257 = vmatpush1.msra.mxu0 0.0
  %1258 = vmatprep.subr.mxu0 0.0
  %1259 = vmatpush1.msra.mxu0 0.0
  %1260 = vmatprep.subr.mxu0 0.0
  %1261 = vmatpush1.msra.mxu0 0.0
  %1262 = vmatprep.subr.mxu0 0.0
  %1263 = vmatpush1.msra.mxu0 0.0
  %1264 = vmatprep.subr.mxu0 0.0
  %1265 = vmatpush1.msra.mxu0 0.0
  %1266 = vmatprep.subr.mxu0 0.0
  %1267 = vmatpush1.msra.mxu0 0.0
  %1268 = vmatprep.subr.mxu0 0.0
  %1269 = vmatpush1.msra.mxu0 0.0
  %1270 = vmatprep.subr.mxu0 0.0
  %1271 = vmatpush1.msra.mxu0 0.0
  %1272 = vmatprep.subr.mxu0 0.0
  %1273 = vmatpush1.msra.mxu0 0.0
  %1274 = vmatprep.subr.mxu0 0.0
  %1275 = vmatpush1.msra.mxu0 0.0
  %1276 = vmatprep.subr.mxu0 0.0
  %1277 = vmatpush1.msra.mxu0 0.0
  %1278 = vmatprep.mubr.f32.mxu0 0.0
  %1279 = vmatmul.mubr.f32.gmra.mrb[0].mxu0 %v1212
  %v1280 = vpop.f32.mrb[0].mxu0
  %v1281 = vadd.f32 0.0, %v1280
  %v1282 = vpop.f32.mrb[0].mxu0
  %1283 = vdwg.mxu0
  %1285 = vrot.lane.b32.xlu0 %v363, 4
  %v1286 = vpop.permute.xlu0 %1285
  %1289 = vrot.lane.b32.xlu0 %v516, 8
  %v1290 = vpop.permute.xlu0 %1289
  %1293 = vrot.lane.b32.xlu0 %v669, 12
  %v1294 = vpop.permute.xlu0 %1293
  %1297 = vrot.lane.b32.xlu0 %v822, 16
  %v1298 = vpop.permute.xlu0 %1297
  %1301 = vrot.lane.b32.xlu0 %v975, 20
  %v1302 = vpop.permute.xlu0 %1301
  %1305 = vrot.lane.b32.xlu0 %v1128, 24
  %v1306 = vpop.permute.xlu0 %1305
  %1309 = vrot.lane.b32.xlu0 %v1281, 28
  %v1310 = vpop.permute.xlu0 %1309
  %vm1312 = vcmask 31744
  %v1313 = vsel %vm1312, %v213, %v1286
  %vm1314 = vcmask 64512
  %v1315 = vsel %vm1314, %v1313, %v1290
  %vm1316 = vcmask 97280
  %v1317 = vsel %vm1316, %v1315, %v1294
  %vm1318 = vcmask 130048
  %v1319 = vsel %vm1318, %v1317, %v1298
  %vm1320 = vcmask 162816
  %v1321 = vsel %vm1320, %v1319, %v1302
  %vm1322 = vcmask 195584
  %v1323 = vsel %vm1322, %v1321, %v1306
  %vm1324 = vcmask 228352
  %v1325 = vsel %vm1324, %v1323, %v1310
  %1326 = vst.msk [vmem:[%s5] sm:$0xff] %vm69, %v1325
  // Predicated region
  $region22: #{custom_res_forward.1} parent=0 // pred_check
    _
  $region23: #{custom_res_forward.1} parent=0 // pred_check_branch
    %1328 = sbr.rel (0) target = $region25
  $region24: #{custom_res_forward.1} parent=0 // pred_region
    _
  $region25: #{custom_res_forward.1} parent=0 // pred_fallthru
    _
  // Predicated region
  $region26: #{custom_res_forward.1} parent=0 // pred_check
    _
  $region27: #{custom_res_forward.1} parent=0 // pred_check_branch
    %1330 = sbr.rel (0) target = $region29
  $region28: #{custom_res_forward.1} parent=0 // pred_region
    _
  $region29: #{custom_res_forward.1} parent=0 // pred_fallthru
    _

</llo_original>
